<compile_context>
chip_gen: v6e
topology: v6e:2x2x1
jax: 0.10.0
libtpu: 0.0.40
codegen_flags: <defaults>
</compile_context>

<pallas_src>
import jax
import jax.numpy as jnp
from jax.experimental import pallas as pl
from jax.experimental.pallas import tpu as pltpu

_LANE = 128
_NEG_INF = -1e30  # pad value for padded vocab columns: exp(pad - max) == 0.0

_COMPILER_PARAMS = pltpu.CompilerParams(
    dimension_semantics=("parallel",),      # rows are independent -> megacore
    vmem_limit_bytes=32 * 1024 * 1024,      # explicit, plenty of headroom
)


def _round_up(x, m):
    return (x + m - 1) // m * m


def _prep_table(table):
    """Pad vocab columns to a multiple of 128 and expose rows as (V, 1, Vp)."""
    V, C = table.shape
    Vp = _round_up(C, _LANE)
    if Vp != C:
        table = jnp.pad(table, ((0, 0), (0, Vp - C)), constant_values=_NEG_INF)
    return table.reshape(V, 1, Vp), Vp


# ---------------------------------------------------------------------------
# Kernels (one grid step == one token row; the gather itself is done by the
# BlockSpec index_map of `row_ref`, which reads the token id from SMEM).
# ---------------------------------------------------------------------------
def _embed_loss_kernel(idx_ref, tgt_ref, row_ref, logits_ref, nll_ref):
    i = pl.program_id(0)

    row = row_ref[...]                 # (1, 1, Vp) f32 — the gathered table row
    logits_ref[...] = row              # lane-dense store (Vp % 128 == 0)

    # Cross-entropy for this row WITHOUT materializing log-softmax:
    #   nll = logsumexp(row) - row[target]
    m = jnp.max(row, axis=-1, keepdims=True)                         # (1,1,1)
    lse = m + jnp.log(jnp.sum(jnp.exp(row - m), axis=-1, keepdims=True))
    t = tgt_ref[i]                                                   # SMEM scalar
    cols = jax.lax.broadcasted_iota(jnp.int32, row.shape, 2)
    logit_t = jnp.sum(jnp.where(cols == t, row, 0.0), axis=-1, keepdims=True)
    nll = lse - logit_t                                              # (1,1,1)

    # Per-row partial loss, broadcast across 128 lanes so the store is
    # lane-dense; the wrapper reads lane 0 and takes the mean.
    nll_ref[...] = jnp.broadcast_to(nll, nll_ref.shape)


def _embed_kernel(idx_ref, row_ref, logits_ref):
    """targets=None path: pure gather, no softmax / loss work at all."""
    del idx_ref  # consumed only by the BlockSpec index_map
    logits_ref[...] = row_ref[...]


# ---------------------------------------------------------------------------
# pallas_call wrappers
# ---------------------------------------------------------------------------
@jax.jit
def _bigram_with_loss(idx_flat, tgt_flat, table):
    N = idx_flat.shape[0]
    V = table.shape[1]
    table_p, Vp = _prep_table(table)

    grid_spec = pltpu.PrefetchScalarGridSpec(
        num_scalar_prefetch=2,            # idx, targets -> SMEM
        grid=(N,),
        in_specs=[
            # Data-dependent gather: DMA table row idx[i] (HBM -> VMEM).
            pl.BlockSpec((1, 1, Vp), lambda i, idx, tgt: (idx[i], 0, 0)),
        ],
        out_specs=[
            pl.BlockSpec((1, 1, Vp), lambda i, idx, tgt: (i, 0, 0)),     # logits
            pl.BlockSpec((1, 1, _LANE), lambda i, idx, tgt: (i, 0, 0)),  # nll
        ],
    )

    logits_p, nll = pl.pallas_call(
        _embed_loss_kernel,
        out_shape=(
            jax.ShapeDtypeStruct((N, 1, Vp), jnp.float32),
            jax.ShapeDtypeStruct((N, 1, _LANE), jnp.float32),
        ),
        grid_spec=grid_spec,
        compiler_params=_COMPILER_PARAMS,
    )(idx_flat, tgt_flat, table_p)

    logits = logits_p.reshape(N, Vp)
    if Vp != V:
        logits = logits[:, :V]
    loss = jnp.sum(nll[:, 0, 0]) / jnp.float32(N)    # mean over N rows
    return logits, loss


@jax.jit
def _bigram_logits_only(idx_flat, table):
    N = idx_flat.shape[0]
    V = table.shape[1]
    table_p, Vp = _prep_table(table)

    grid_spec = pltpu.PrefetchScalarGridSpec(
        num_scalar_prefetch=1,            # idx -> SMEM
        grid=(N,),
        in_specs=[
            pl.BlockSpec((1, 1, Vp), lambda i, idx: (idx[i], 0, 0)),
        ],
        out_specs=pl.BlockSpec((1, 1, Vp), lambda i, idx: (i, 0, 0)),
    )

    logits_p = pl.pallas_call(
        _embed_kernel,
        out_shape=jax.ShapeDtypeStruct((N, 1, Vp), jnp.float32),
        grid_spec=grid_spec,
        compiler_params=_COMPILER_PARAMS,
    )(idx_flat, table_p)

    logits = logits_p.reshape(N, Vp)
    if Vp != V:
        logits = logits[:, :V]
    return logits


def bigram_forward(idx, table, targets=None):
    """Mirrors BigramLanguageModel.forward."""
    B, T = idx.shape
    V = table.shape[0]
    N = B * T
    idx_flat = idx.reshape(N).astype(jnp.int32)

    if targets is None:
        logits = _bigram_logits_only(idx_flat, table)
        return logits.reshape(B, T, V), None

    tgt_flat = targets.reshape(N).astype(jnp.int32)
    logits, loss = _bigram_with_loss(idx_flat, tgt_flat, table)
    # PyTorch re-binds `logits` to the (B*T, C) view before returning.
    return logits, loss


# TODO(synk): generate() (autoregressive multinomial sampling loop) is host-side
# control flow around forward(); not implemented as a kernel.


def _reference(idx, table, targets):
    """Pure-JAX reference for a sanity check."""
    B, T = idx.shape
    V = table.shape[0]
    logits = table[idx].reshape(B * T, V)
    tgt = targets.reshape(B * T)
    logp = jax.nn.log_softmax(logits, axis=-1)
    loss = -jnp.mean(logp[jnp.arange(B * T), tgt])
    return logits, loss


if __name__ == "__main__":
    # Small, deterministic synthetic setup.
    vocab_size = 65          # typical tiny-shakespeare char vocab
    B, T = 2, 8

    key = jax.random.PRNGKey(0)
    k_tab, k_idx, k_tgt = jax.random.split(key, 3)

    # nn.Embedding default init: N(0, 1)
    table = jax.random.normal(k_tab, (vocab_size, vocab_size), dtype=jnp.float32)
    idx = jax.random.randint(k_idx, (B, T), 0, vocab_size, dtype=jnp.int32)
    targets = jax.random.randint(k_tgt, (B, T), 0, vocab_size, dtype=jnp.int32)

    logits, loss = bigram_forward(idx, table, targets)
    logits = jax.block_until_ready(logits)
    loss = jax.block_until_ready(loss)

    # Correctness check against the pure-JAX reference.
    ref_logits, ref_loss = _reference(idx, table, targets)
    assert logits.shape == (B * T, vocab_size)
    assert jnp.allclose(logits, ref_logits, atol=1e-5, rtol=1e-5)
    assert jnp.allclose(loss, ref_loss, atol=1e-5, rtol=1e-5)

    # Also exercise the targets=None path (loss-free kernel variant).
    logits_no_tgt, loss_none = bigram_forward(idx, table, None)
    jax.block_until_ready(logits_no_tgt)
    assert logits_no_tgt.shape == (B, T, vocab_size)
    assert loss_none is None
    assert jnp.allclose(logits_no_tgt.reshape(B * T, vocab_size), ref_logits,
                        atol=1e-5, rtol=1e-5)

    print("KERNEL_OK")
</pallas_src>

<mosaic_0001>
module attributes {stable_mosaic.version = 11 : i64} {
  func.func @_embed_loss_kernel(%arg0: i32, %arg1: memref<16xi32, #tpu.memory_space<smem>>, %arg2: memref<16xi32, #tpu.memory_space<smem>>, %arg3: memref<1x1x128xf32, #tpu.memory_space<vmem>>, %arg4: memref<1x1x128xf32, #tpu.memory_space<vmem>>, %arg5: memref<1x1x128xf32, #tpu.memory_space<vmem>>) attributes {dimension_semantics = [#tpu.dimension_semantics<parallel>], iteration_bounds = array<i64: 16>, scalar_prefetch = 2 : i64, scratch_operands = 0 : i64, tpu.core_type = #tpu.core_type<tc>, window_params = [{transform_indices = @transform_0, window_bounds = array<i64: 1, 1, 128>}, {transform_indices = @transform_1, window_bounds = array<i64: 1, 1, 128>}, {transform_indices = @transform_2, window_bounds = array<i64: 1, 1, 128>}]} {
    %c0 = arith.constant 0 : index
    %c0_0 = arith.constant 0 : index
    %c0_1 = arith.constant 0 : index
    %0 = vector.load %arg3[%c0, %c0_0, %c0_1] : memref<1x1x128xf32, #tpu.memory_space<vmem>>, vector<1x1x128xf32>
    %c0_2 = arith.constant 0 : index
    %c0_3 = arith.constant 0 : index
    %c0_4 = arith.constant 0 : index
    %1 = vector.load %arg4[%c0_2, %c0_3, %c0_4] : memref<1x1x128xf32, #tpu.memory_space<vmem>>, vector<1x1x128xf32>
    tpu.vector_store %arg4[%c0_2, %c0_3, %c0_4], %0 {strides = array<i32>} : memref<1x1x128xf32, #tpu.memory_space<vmem>>, vector<1x1x128xf32>,
    %cst = arith.constant dense<0xFF800000> : vector<1x1xf32>
    %2 = vector.multi_reduction <maximumf>, %0, %cst [2] : vector<1x1x128xf32> to vector<1x1xf32>
    %3 = vector.shape_cast %2 : vector<1x1xf32> to vector<1x1x1xf32>
    %4 = vector.broadcast %3 : vector<1x1x1xf32> to vector<1x1x128xf32>
    %5 = arith.subf %0, %4 : vector<1x1x128xf32>
    %6 = math.exp %5 : vector<1x1x128xf32>
    %cst_5 = arith.constant dense<0.000000e+00> : vector<1x1xf32>
    %7 = vector.multi_reduction <add>, %6, %cst_5 [2] : vector<1x1x128xf32> to vector<1x1xf32>
    %8 = vector.shape_cast %7 : vector<1x1xf32> to vector<1x1x1xf32>
    %9 = math.log %8 : vector<1x1x1xf32>
    %10 = arith.addf %3, %9 : vector<1x1x1xf32>
    %11 = arith.index_cast %arg0 : i32 to index
    %12 = memref.load %arg2[%11] : memref<16xi32, #tpu.memory_space<smem>>
    %13 = tpu.iota {dimensions = array<i32: 2>} : vector<1x1x128xi32>
    %14 = vector.broadcast %12 : i32 to vector<1x1x128xi32>
    %15 = arith.cmpi eq, %13, %14 : vector<1x1x128xi32>
    %cst_6 = arith.constant 0.000000e+00 : f32
    %16 = vector.broadcast %cst_6 : f32 to vector<1x1x128xf32>
    %17 = arith.select %15, %0, %16 : vector<1x1x128xi1>, vector<1x1x128xf32>
    %cst_7 = arith.constant dense<0.000000e+00> : vector<1x1xf32>
    %18 = vector.multi_reduction <add>, %17, %cst_7 [2] : vector<1x1x128xf32> to vector<1x1xf32>
    %19 = vector.shape_cast %18 : vector<1x1xf32> to vector<1x1x1xf32>
    %20 = arith.subf %10, %19 : vector<1x1x1xf32>
    %21 = vector.shape_cast %20 : vector<1x1x1xf32> to vector<1x1x1xf32>
    %22 = vector.broadcast %21 : vector<1x1x1xf32> to vector<1x1x128xf32>
    %c0_8 = arith.constant 0 : index
    %c0_9 = arith.constant 0 : index
    %c0_10 = arith.constant 0 : index
    %23 = vector.load %arg5[%c0_8, %c0_9, %c0_10] : memref<1x1x128xf32, #tpu.memory_space<vmem>>, vector<1x1x128xf32>
    tpu.vector_store %arg5[%c0_8, %c0_9, %c0_10], %22 {strides = array<i32>} : memref<1x1x128xf32, #tpu.memory_space<vmem>>, vector<1x1x128xf32>,
    return
  }
  func.func @transform_0(%arg0: i32, %arg1: memref<16xi32, #tpu.memory_space<smem>>, %arg2: memref<16xi32, #tpu.memory_space<smem>>) -> (i32, i32, i32) {
    %0 = arith.index_cast %arg0 : i32 to index
    %1 = memref.load %arg1[%0] : memref<16xi32, #tpu.memory_space<smem>>
    %c0_i32 = arith.constant 0 : i32
    %c0_i32_0 = arith.constant 0 : i32
    %c0_i32_1 = arith.constant 0 : i32
    return %1, %c0_i32, %c0_i32_0 : i32, i32, i32
  }
  func.func @transform_1(%arg0: i32, %arg1: memref<16xi32, #tpu.memory_space<smem>>, %arg2: memref<16xi32, #tpu.memory_space<smem>>) -> (i32, i32, i32) {
    %c0_i32 = arith.constant 0 : i32
    %c0_i32_0 = arith.constant 0 : i32
    %c0_i32_1 = arith.constant 0 : i32
    return %arg0, %c0_i32, %c0_i32_0 : i32, i32, i32
  }
  func.func @transform_2(%arg0: i32, %arg1: memref<16xi32, #tpu.memory_space<smem>>, %arg2: memref<16xi32, #tpu.memory_space<smem>>) -> (i32, i32, i32) {
    %c0_i32 = arith.constant 0 : i32
    %c0_i32_0 = arith.constant 0 : i32
    %c0_i32_1 = arith.constant 0 : i32
    return %arg0, %c0_i32, %c0_i32_0 : i32, i32, i32
  }
}

</mosaic_0001>

<llo_original>
// kernel: _bigram_with_loss.1
$region0: #{_bigram_with_loss.1}
  #allocation0 [shape = 'u32[]', space=smem, size = 0x4, offset = 0x4, fixed_abs, tag = 'smem constant byte address 0x4 - core index']
  #allocation1 [shape = 'u32[144,128]{1,0:T(1,128)}', space=vmem, size = 0x12000, scoped, tag = 'internal scratch']
  #allocation2 [shape = 's32[1]{0}', space=sflag, size = 0x4, scoped, tag = 'scoped memory for _bigram_with_loss.1']
  #allocation3 [shape = 'u8[512]{0}', space=smem, size = 0x200, scoped, tag = 'prefetched SMEM operand 0']
  #allocation4 [shape = 'u8[512]{0}', space=smem, size = 0x200, scoped, tag = 'prefetched SMEM operand 1']
  %s0 = inlined_call_operand.vmem [shape: s32[16], index: 0, kind: input, shape index: {}]
  %s1 = inlined_call_operand.vmem [shape: s32[16], index: 1, kind: input, shape index: {}]
  %s2 = inlined_call_operand.vmem [shape: f32[65,1,128], index: 2, kind: input, shape index: {}]
  %s3 = inlined_call_operand.hbm [shape: f32[16,1,128], index: 3, kind: output, shape index: {0}]
  %s4 = inlined_call_operand.vmem [shape: f32[16,1,128], index: 4, kind: output, shape index: {1}]
  %5 = xla_tuple %s3, %s4
  %s6 = sld [smem:[#allocation0]]
  $region45: #{_bigram_with_loss.1} parent=0
    _
  %s8 = ssub.s32 1, %s6
  %s9 = scalar_select 0, %s8, %s6
  %s10 = sshll.u32 %s0, 4
  %s11 = int_to_ptr.vmem [resolvable:$true] %s10
  %13 = dma.vmem_to_smem %s11, 16, [#allocation3], [#allocation2]
  %s14 = sshll.u32 %s1, 4
  %s15 = int_to_ptr.vmem [resolvable:$true] %s14
  %17 = dma.vmem_to_smem %s15, 16, [#allocation4], [#allocation2]
  %18 = dma.done [#allocation2], 32
  %19 = sfence
  $region1: #{_bigram_with_loss.1} parent=0
    #allocation5 [shape = 'u8[1024]{0}', space=vmem, size = 0x400, scoped, tag = 'output window, operand 0']
    #allocation6 [shape = 's32[2]{0}', space=sflag, size = 0x8, scoped, tag = 'scoped memory for _bigram_with_loss.1']
    %20 = vsyncpa [#allocation6], 0
    %s21 = scalar_lea.sflag [#allocation6], 1
    %22 = vsyncpa %s21, 0
    loop: start=0, step=1, limit=18
    $region2: #{_bigram_with_loss.1} parent=1 // loop_pre_header
      _
    $region3: #{_bigram_with_loss.1} parent=1 // loop_header
      %s24 = sphi 0, %s28
      %p25 = scmp.ge.s32.totalorder %s24, 18
      %s36 = sphi 0, %s38
      %s39 = sphi 0, %s36
      %s40 = sphi 0, %s39
      %s56 = sphi 0, %s40
      %s62 = sphi 0, %s64
      %s65 = sphi 0, %s62
      %s66 = sphi 0, %s65
      %s82 = sphi 0, %s66
      %s88 = sphi 0, %s90
      %s91 = sphi 0, %s88
      %s92 = sphi 0, %s91
      %s108 = sphi 0, %s92
    $region4: #{_bigram_with_loss.1} parent=1 // loop_header_branch
      %27 = sbr.rel (%p25) target = $region8
    $region5: #{_bigram_with_loss.1} parent=1 // loop_body
      %s29 = ssub.s32 %s24, 1
      %s30 = ssub.s32 %s24, 2
      %s31 = sadd.s32 %s24, 1
      %s32 = sld [smem:[#allocation3 + %s24]]
      %s33 = sld [smem:[#allocation3 + %s31]]
      %s34 = ssub.s32 %s32, %s33
      %p35 = scmp.eq.s32.totalorder %s34, 0
      %s37 = sadd.s32 %s36, 1
      %s38 = scalar_select %p35, %s36, %s37
      %p41 = pneg %p35
      %p42 = scmp.eq.s32.totalorder %s24, 15
      %p43 = por %p41, %p42
      %p44 = scmp.ne.s32.totalorder %s36, %s39
      %p45 = scmp.eq.s32.totalorder %s24, 0
      %p46 = por %p44, %p45
      %p47 = scmp.ne.s32.totalorder %s36, %s39
      %p48 = scmp.eq.s32.totalorder %s29, 15
      %p49 = por %p47, %p48
      %p50 = scmp.ne.s32.totalorder %s39, %s40
      %p51 = scmp.eq.s32.totalorder %s29, 0
      %p52 = por %p50, %p51
      %p53 = scmp.ne.s32.totalorder %s39, %s40
      %p54 = scmp.eq.s32.totalorder %s30, 15
      %p55 = por %p53, %p54
      %p57 = scmp.ne.s32.totalorder %s40, %s56
      %p58 = scmp.eq.s32.totalorder %s30, 0
      %p59 = por %p57, %p58
      %s60 = ssub.s32 %s24, %s31
      %p61 = scmp.eq.s32.totalorder %s60, 0
      %s63 = sadd.s32 %s62, 1
      %s64 = scalar_select %p61, %s62, %s63
      %p67 = pneg %p61
      %p68 = scmp.eq.s32.totalorder %s24, 15
      %p69 = por %p67, %p68
      %p70 = scmp.ne.s32.totalorder %s62, %s65
      %p71 = scmp.eq.s32.totalorder %s24, 0
      %p72 = por %p70, %p71
      %p73 = scmp.ne.s32.totalorder %s62, %s65
      %p74 = scmp.eq.s32.totalorder %s29, 15
      %p75 = por %p73, %p74
      %p76 = scmp.ne.s32.totalorder %s65, %s66
      %p77 = scmp.eq.s32.totalorder %s29, 0
      %p78 = por %p76, %p77
      %p79 = scmp.ne.s32.totalorder %s65, %s66
      %p80 = scmp.eq.s32.totalorder %s30, 15
      %p81 = por %p79, %p80
      %p83 = scmp.ne.s32.totalorder %s66, %s82
      %p84 = scmp.eq.s32.totalorder %s30, 0
      %p85 = por %p83, %p84
      %s86 = ssub.s32 %s24, %s31
      %p87 = scmp.eq.s32.totalorder %s86, 0
      %s89 = sadd.s32 %s88, 1
      %s90 = scalar_select %p87, %s88, %s89
      %p93 = pneg %p87
      %p94 = scmp.eq.s32.totalorder %s24, 15
      %p95 = por %p93, %p94
      %p96 = scmp.ne.s32.totalorder %s88, %s91
      %p97 = scmp.eq.s32.totalorder %s24, 0
      %p98 = por %p96, %p97
      %p99 = scmp.ne.s32.totalorder %s88, %s91
      %p100 = scmp.eq.s32.totalorder %s29, 15
      %p101 = por %p99, %p100
      %p102 = scmp.ne.s32.totalorder %s91, %s92
      %p103 = scmp.eq.s32.totalorder %s29, 0
      %p104 = por %p102, %p103
      %p105 = scmp.ne.s32.totalorder %s91, %s92
      %p106 = scmp.eq.s32.totalorder %s30, 15
      %p107 = por %p105, %p106
      %p109 = scmp.ne.s32.totalorder %s92, %s108
      %p110 = scmp.eq.s32.totalorder %s30, 0
      %p111 = por %p109, %p110
      %p112 = scmp.le.s32.totalorder 1, %s24
      %p113 = scmp.lt.s32.totalorder %s24, 17
      %p114 = pnand %p112, %p113
      %p115 = pneg %p114
      // Predicated region
      $region9: #{_bigram_with_loss.1} parent=5 // pred_check
        _
      $region10: #{_bigram_with_loss.1} parent=5 // pred_check_branch
        %117 = sbr.rel (%p114) target = $region12
      $region11: #{_bigram_with_loss.1} parent=5 // pred_region
        %s118 = ssub.s32 %s24, 1
      $region12: #{_bigram_with_loss.1} parent=5 // pred_fallthru
        _
      %p119 = scmp.lt.s32.totalorder %s24, 16
      // Predicated region
      $region13: #{_bigram_with_loss.1} parent=5 // pred_check
        %p120 = pneg %p119
      $region14: #{_bigram_with_loss.1} parent=5 // pred_check_branch
        %122 = sbr.rel (%p120) target = $region16
      $region15: #{_bigram_with_loss.1} parent=5 // pred_region
        // Predicated region
        $region17: #{_bigram_with_loss.1} parent=15 // pred_check
          %p123 = pneg %p46
        $region18: #{_bigram_with_loss.1} parent=15 // pred_check_branch
          %125 = sbr.rel (%p123) target = $region20
        $region19: #{_bigram_with_loss.1} parent=15 // pred_region
          %s126 = sld [smem:[#allocation3 + %s24]]
          %p127 = scmp.lt.s32.totalorder %s126, 64
          %s128 = scalar_select %p127, %s126, 64
          %s129 = scalar_lea.vmem %s2, %s128
          %s130 = sld [smem:[#allocation3 + %s24]]
        $region20: #{_bigram_with_loss.1} parent=15 // pred_fallthru
          _
      $region16: #{_bigram_with_loss.1} parent=5 // pred_fallthru
        _
      %p131 = scmp.le.s32.totalorder 1, %s24
      %p132 = scmp.lt.s32.totalorder %s24, 17
      %p133 = pnand %p131, %p132
      %p134 = pneg %p133
      // Predicated region
      $region21: #{_bigram_with_loss.1} parent=5 // pred_check
        _
      $region22: #{_bigram_with_loss.1} parent=5 // pred_check_branch
        %136 = sbr.rel (%p133) target = $region24
      $region23: #{_bigram_with_loss.1} parent=5 // pred_region
        %s137 = ssub.s32 %s24, 1
        %s138 = sld [smem:[#allocation3 + %s29]]
        %p139 = scmp.lt.s32.totalorder %s138, 64
        %s140 = scalar_select %p139, %s138, 64
        %s141 = scalar_lea.vmem %s2, %s140
        %p142 = pneg %p52
        %p143 = pneg %p49
        %p144 = pneg %p78
        %p145 = pneg %p75
        %s146 = sand.u32 %s65, 1
        %s147 = scalar_lea.sflag [#allocation6], %s146
        %s148 = sand.u32 %s65, 1
        %s149 = scalar_lea.vmem [#allocation5], %s148
        %p150 = pneg %p104
        %p151 = pneg %p101
        %p152 = scmp.lt.s32.totalorder %s29, 15
        %s153 = scalar_select %p152, %s29, 15
        %s154 = scalar_lea.vmem %s4, %s153
        %s155 = sld [smem:[#allocation3 + %s29]]
        %p156 = scmp.lt.s32.totalorder %s155, 64
        %s157 = scalar_select %p156, %s155, 64
        %s158 = scalar_lea.vmem %s2, %s157
        %s159 = sld [smem:[#allocation3 + %s29]]
        %p160 = scmp.lt.s32.totalorder %s29, 15
        %s161 = scalar_select %p160, %s29, 15
        %s162 = scalar_lea.vmem %s4, %s161
        %v163 = vld [vmem:[%s158] sm:$0x1]
        %164 = vst [vmem:[%s149] sm:$0x1] %v163
        %vm165 = vcmask 1040384
        %v166 = vsel %vm165, %v163, -inf
        %167 = vmax.xlane.f32.xlu0 %v166
        %v168 = vpop.xlane.xlu0 %167
        %v169 = vsub.f32 %v163, %v168
        %v170 = vmul.f32 %v169, 1.442695
        %v171 = vpow.pop %v170
        %v172 = vsel %vm165, %v171, 0.0
        %173 = vadd.xlane.f32.xlu0 %v172
        %v174 = vpop.xlane.xlu0 %173
        %v175 = vlog2.pop %v174
        %v176 = vmul.f32 %v175, 0.6931472
        %v177 = vadd.f32 %v168, %v176
        %s178 = sld [smem:[#allocation4 + %s29]]
        %v179 = vlaneseq
        %v180 = vand.u32 %v179, 127
        %v181 = vstv %s178
        %vm182 = vcmp.eq.s32.totalorder %v180, %v181
        %v183 = vsel %vm182, %v163, 0.0
        %v184 = vsel %vm165, %v183, 0.0
        %185 = vadd.xlane.f32.xlu0 %v184
        %v186 = vpop.xlane.xlu0 %185
        %v187 = vsub.f32 %v177, %v186
        %188 = vst [vmem:[%s162] sm:$0x1] %v187
        %s189 = sand.u32 %s65, 1
        %s190 = scalar_lea.sflag [#allocation6], %s189
        %s191 = sand.u32 %s65, 1
        %s192 = scalar_lea.vmem [#allocation5], %s191
        %p193 = scmp.lt.s32.totalorder %s29, 15
        %s194 = scalar_select %p193, %s29, 15
        %s195 = scalar_lea.vmem %s4, %s194
        // Predicated region
        $region25: #{_bigram_with_loss.1} parent=23 // pred_check
          %p196 = pneg %p75
        $region26: #{_bigram_with_loss.1} parent=23 // pred_check_branch
          %198 = sbr.rel (%p196) target = $region28
        $region27: #{_bigram_with_loss.1} parent=23 // pred_region
          %s200 = ssub.s32 16, 16
          %201 = vsyncadd %s190, %s200
          %s202 = smul.addr %s29, 16
          %s203 = scalar_lea.hbm %s3, %s202
          %s205 = sshll.u32 %s192, 4
          %s206 = int_to_ptr.vmem [resolvable:$true] %s205
          %208 = dma.vmem_to_hbm [thread:$0]  %s206, 16, %s203, %s190
        $region28: #{_bigram_with_loss.1} parent=23 // pred_fallthru
          _
        // Predicated region
        $region29: #{_bigram_with_loss.1} parent=23 // pred_check
          %p209 = pneg %p101
        $region30: #{_bigram_with_loss.1} parent=23 // pred_check_branch
          %211 = sbr.rel (%p209) target = $region32
        $region31: #{_bigram_with_loss.1} parent=23 // pred_region
          _
        $region32: #{_bigram_with_loss.1} parent=23 // pred_fallthru
          _
      $region24: #{_bigram_with_loss.1} parent=5 // pred_fallthru
        _
      %p212 = scmp.le.s32.totalorder 2, %s24
      // Predicated region
      $region33: #{_bigram_with_loss.1} parent=5 // pred_check
        %p213 = pneg %p212
      $region34: #{_bigram_with_loss.1} parent=5 // pred_check_branch
        %215 = sbr.rel (%p213) target = $region36
      $region35: #{_bigram_with_loss.1} parent=5 // pred_region
        %s216 = ssub.s32 %s24, 2
        // Predicated region
        $region37: #{_bigram_with_loss.1} parent=35 // pred_check
          %p217 = pneg %p81
        $region38: #{_bigram_with_loss.1} parent=35 // pred_check_branch
          %219 = sbr.rel (%p217) target = $region40
        $region39: #{_bigram_with_loss.1} parent=35 // pred_region
          %s220 = sand.u32 %s66, 1
          %s221 = scalar_lea.sflag [#allocation6], %s220
          %s222 = sand.u32 %s66, 1
          %s223 = scalar_lea.vmem [#allocation5], %s222
          %224 = dma.done %s221, 16
        $region40: #{_bigram_with_loss.1} parent=35 // pred_fallthru
          _
        // Predicated region
        $region41: #{_bigram_with_loss.1} parent=35 // pred_check
          %p225 = pneg %p107
        $region42: #{_bigram_with_loss.1} parent=35 // pred_check_branch
          %227 = sbr.rel (%p225) target = $region44
        $region43: #{_bigram_with_loss.1} parent=35 // pred_region
          %p228 = scmp.lt.s32.totalorder %s30, 15
          %s229 = scalar_select %p228, %s30, 15
          %s230 = scalar_lea.vmem %s4, %s229
        $region44: #{_bigram_with_loss.1} parent=35 // pred_fallthru
          _
      $region36: #{_bigram_with_loss.1} parent=5 // pred_fallthru
        _
    $region6: #{_bigram_with_loss.1} parent=1 // loop_footer
      %s28 = sadd.s32 1, %s24
    $region7: #{_bigram_with_loss.1} parent=1 // loop_footer_branch
      %23 = sbr.rel target = $region3
    $region8: #{_bigram_with_loss.1} parent=1 // loop_exit
      _
    %231 = vsyncpa [#allocation6], 1
    %s232 = scalar_lea.sflag [#allocation6], 1
    %233 = vsyncpa %s232, 1

</llo_original>
